<compile_context>
chip_gen: v6e
topology: v6e:2x2x1
jax: 0.10.0
libtpu: 0.0.40
codegen_flags: <defaults>
</compile_context>

<pallas_src>
import math

import jax
import jax.numpy as jnp
from jax.experimental import pallas as pl
from jax.experimental.pallas import tpu as pltpu


def _erf_f32(x):
    """erf via Abramowitz & Stegun 7.1.26 (max abs error 1.5e-7 -> f32-exact here).

    Uses only exp / divide / abs / where so it lowers in Mosaic on all TPU gens.
    """
    a1, a2, a3, a4, a5 = (0.254829592, -0.284496736, 1.421413741,
                          -1.453152027, 1.061405429)
    p = 0.3275911
    ax = jnp.abs(x)
    t = 1.0 / (1.0 + p * ax)
    poly = ((((a5 * t + a4) * t + a3) * t + a2) * t + a1) * t
    y = 1.0 - poly * jnp.exp(-(ax * ax))
    return jnp.where(x < 0.0, -y, y)


def _causal_conv_kernel(x_ref, wconv_ref, wout_ref, o_ref, xpad_ref):
    # x_ref    : (bb, T, C)        input batch-group (original dtype)
    # wconv_ref: (K, C, H)         per-tap conv weights, compute dtype
    # wout_ref : (H, H)            out_proj weight already transposed (in, out)
    # o_ref    : (bb, T, H)
    # xpad_ref : (bb, pad + T, C)  compute-dtype staging buffer (causal left zeros)
    bb, T, C = x_ref.shape
    K, _, H = wconv_ref.shape
    pad = xpad_ref.shape[1] - T
    cdt = wconv_ref.dtype  # MXU compute dtype (bf16 on all gens, or f32)

    # Stage x into the causally left-padded buffer, casting once to the compute dtype.
    # Pad rows are rewritten every step (tiny) -> megacore-safe, no program_id gating.
    xpad_ref[:, :pad, :] = jnp.zeros((bb, pad, C), cdt)
    xpad_ref[:, pad:, :] = x_ref[...].astype(cdt)

    # Time-chunked conv + GELU + out_proj keeps the live register set bounded at
    # large T (avoids full-tile f32 acc/h spills). One chunk at small T.
    if T <= 512:
        tc = T
    elif T % 512 == 0:
        tc = 512
    elif T % 256 == 0:
        tc = 256
    else:
        tc = T
    n_chunks = T // tc

    for c in range(n_chunks):              # static Python loop (usually 1 iteration)
        t0 = c * tc
        rows = bb * tc
        acc = jnp.zeros((rows, H), jnp.float32)
        for k in range(K):                 # static, K is small -> unrolled
            # Tap k contributes x[t - (K-1) + k]; shifted read of the padded buffer.
            start = pad - (K - 1) + k + t0
            xk = xpad_ref[:, pl.ds(start, tc), :].reshape(rows, C)
            acc = acc + jnp.dot(xk, wconv_ref[k],
                                preferred_element_type=jnp.float32)

        # Exact (erf-form) GELU in f32, matching nn.GELU() default.
        h = 0.5 * acc * (1.0 + _erf_f32(acc * 0.7071067811865476))

        # out_proj (bias=False): y = h @ W_out^T  (wout_ref is already W_out^T).
        y = jnp.dot(h.astype(cdt), wout_ref[...],
                    preferred_element_type=jnp.float32)
        y = y.reshape(bb, tc, H).astype(o_ref.dtype)
        if n_chunks == 1:
            o_ref[...] = y
        else:
            o_ref[:, pl.ds(t0, tc), :] = y


def prepare_params(w_conv, w_out, compute_dtype=jnp.bfloat16):
    """One-time parameter setup (do NOT repeat per forward call).

    w_conv: (H, C, K) nn.Conv1d weight -> (K, C, H) tap-major stack (w_taps[k] = w[:, :, k].T)
    w_out : (H, H)    nn.Linear weight -> (H_in, H_out) transposed

    bf16 is the right compute dtype on v5e/v6e/v7x (the MXU is bf16-native on all of
    them); accumulation and the GELU stay f32 inside the kernel.
    """
    w_taps = jnp.transpose(w_conv, (2, 1, 0)).astype(compute_dtype)
    w_out_t = jnp.transpose(w_out).astype(compute_dtype)
    return w_taps, w_out_t


def causal_convolution(x, w_taps, w_out_t, *, batch_block=None, vmem_limit_bytes=None):
    """x: (B, T, C); w_taps: (K, C, H); w_out_t: (H, H). Returns (B, T, H) in x.dtype."""
    B, T, C = x.shape
    K, Cw, H = w_taps.shape
    assert Cw == C, "w_taps must be (K, C, H) with C matching x"
    assert w_out_t.shape == (H, H), "w_out_t must be (H, H)"
    assert T % 8 == 0, "T must be a multiple of 8 so in-kernel reshapes are pure layout folds"

    # Default: one batch element per grid step -> >=B pipelined steps, megacore-friendly.
    bb = 1 if batch_block is None else batch_block
    assert B % bb == 0, "batch_block must divide B"

    cdt = w_taps.dtype
    # Causal pad region, rounded up to the sublane packing of the compute dtype so the
    # main staging store starts sublane-aligned (8 rows for f32, 16 for bf16).
    packing = 8 * max(1, 4 // jnp.dtype(cdt).itemsize)
    pad = ((max(K - 1, 1) + packing - 1) // packing) * packing

    # Rough VMEM budget (input+output double-buffered, weights single-buffered, scratch).
    isz_x = x.dtype.itemsize
    isz_c = jnp.dtype(cdt).itemsize
    block_bytes = (2 * bb * T * C * isz_x
                   + 2 * bb * T * H * isz_x
                   + K * C * H * isz_c
                   + H * H * isz_c
                   + bb * (T + pad) * C * isz_c)
    if vmem_limit_bytes is None:
        vmem_limit_bytes = int(min(max(4 * block_bytes, 32 * 1024 * 1024),
                                   64 * 1024 * 1024))  # cap: v7x physical VMEM

    cost = pl.CostEstimate(
        flops=int(2 * B * T * (K * C * H + H * H)),
        transcendentals=int(B * T * H),
        bytes_accessed=int(B * T * C * isz_x + B * T * H * isz_x
                           + K * C * H * isz_c + H * H * isz_c),
    )

    return pl.pallas_call(
        _causal_conv_kernel,
        out_shape=jax.ShapeDtypeStruct((B, T, H), x.dtype),
        grid_spec=pltpu.PrefetchScalarGridSpec(
            num_scalar_prefetch=0,
            grid=(B // bb,),
            in_specs=[
                pl.BlockSpec((bb, T, C), lambda b: (b, 0, 0)),
                # Weights: constant index_map -> VMEM-resident; single-buffered.
                pl.BlockSpec((K, C, H), lambda b: (0, 0, 0),
                             pipeline_mode=pl.Buffered(1)),
                pl.BlockSpec((H, H), lambda b: (0, 0),
                             pipeline_mode=pl.Buffered(1)),
            ],
            out_specs=pl.BlockSpec((bb, T, H), lambda b: (b, 0, 0)),
            scratch_shapes=[
                pltpu.VMEM((bb, T + pad, C), cdt),   # padded-x staging, compute dtype
            ],
        ),
        compiler_params=pltpu.CompilerParams(
            dimension_semantics=("parallel",),
            vmem_limit_bytes=vmem_limit_bytes,
        ),
        cost_estimate=cost,
    )(x, w_taps, w_out_t)


def _reference(x, w_conv, w_out, kernel_size):
    """Pure-JAX reference matching the PyTorch forward."""
    B, T, C = x.shape
    K = kernel_size
    H = w_conv.shape[0]
    x_pad = jnp.pad(x, ((0, 0), (K - 1, 0), (0, 0)))
    y = jnp.zeros((B, T, H), jnp.float32)
    for k in range(K):
        y = y + jnp.einsum("btc,hc->bth", x_pad[:, k:k + T, :], w_conv[:, :, k],
                           precision=jax.lax.Precision.HIGHEST)
    y = jax.nn.gelu(y, approximate=False)
    return jnp.einsum("bth,oh->bto", y, w_out, precision=jax.lax.Precision.HIGHEST)


if __name__ == "__main__":
    B, T = 2, 16
    input_size, hidden_size, kernel_size = 4, 32, 3

    key = jax.random.PRNGKey(0)
    k1, k2, k3 = jax.random.split(key, 3)

    x = jax.random.normal(k1, (B, T, input_size), dtype=jnp.float32)
    # Deterministic synthetic parameters (shapes follow nn.Conv1d / nn.Linear).
    w_conv = jax.random.normal(k2, (hidden_size, input_size, kernel_size),
                               dtype=jnp.float32) * (1.0 / math.sqrt(input_size * kernel_size))
    w_out = jax.random.normal(k3, (hidden_size, hidden_size),
                              dtype=jnp.float32) * (1.0 / math.sqrt(hidden_size))

    ref = _reference(x, w_conv, w_out, kernel_size)

    # bf16 MXU path (recommended on v5e / v6e / v7x); accumulation + GELU stay f32.
    wt_bf16, wo_bf16 = prepare_params(w_conv, w_out, jnp.bfloat16)
    out_bf16 = jax.block_until_ready(causal_convolution(x, wt_bf16, wo_bf16))
    assert out_bf16.shape == (B, T, hidden_size)
    assert out_bf16.dtype == x.dtype
    assert jnp.allclose(out_bf16, ref, atol=5e-2, rtol=5e-2), "bf16 path mismatch vs reference"

    # f32 weight path (strict-accuracy option), tighter tolerance.
    wt_f32, wo_f32 = prepare_params(w_conv, w_out, jnp.float32)
    out_f32 = jax.block_until_ready(causal_convolution(x, wt_f32, wo_f32))
    assert jnp.allclose(out_f32, ref, atol=1e-3, rtol=1e-3), "f32 path mismatch vs reference"

    print("KERNEL_OK")
</pallas_src>

<mosaic_0001>
module attributes {stable_mosaic.version = 11 : i64} {
  func.func @_causal_conv_kernel(%arg0: i32, %arg1: memref<1x16x4xf32, #tpu.memory_space<vmem>>, %arg2: memref<3x4x32xbf16, #tpu.memory_space<vmem>>, %arg3: memref<32x32xbf16, #tpu.memory_space<vmem>>, %arg4: memref<1x16x32xf32, #tpu.memory_space<vmem>>, %arg5: memref<1x32x4xbf16, #tpu.memory_space<vmem>>) attributes {dimension_semantics = [#tpu.dimension_semantics<parallel>], iteration_bounds = array<i64: 2>, scalar_prefetch = 0 : i64, scratch_operands = 1 : i64, tpu.core_type = #tpu.core_type<tc>, window_params = [{transform_indices = @transform_0, window_bounds = array<i64: 1, 16, 4>}, {pipeline_mode = #tpu.pipeline_mode<synchronous>, transform_indices = @transform_1, window_bounds = array<i64: 3, 4, 32>}, {pipeline_mode = #tpu.pipeline_mode<synchronous>, transform_indices = @transform_2, window_bounds = array<i64: 32, 32>}, {transform_indices = @transform_3, window_bounds = array<i64: 1, 16, 32>}]} {
    %cst = arith.constant 0.000000e+00 : bf16
    %0 = vector.broadcast %cst : bf16 to vector<1x16x4xbf16>
    %c0 = arith.constant 0 : index
    %c0_0 = arith.constant 0 : index
    %c0_1 = arith.constant 0 : index
    %1 = vector.load %arg5[%c0, %c0_0, %c0_1] : memref<1x32x4xbf16, #tpu.memory_space<vmem>>, vector<1x16x4xbf16>
    tpu.vector_store %arg5[%c0, %c0_0, %c0_1], %0 {strides = array<i32>} : memref<1x32x4xbf16, #tpu.memory_space<vmem>>, vector<1x16x4xbf16>,
    %c0_2 = arith.constant 0 : index
    %c0_3 = arith.constant 0 : index
    %c0_4 = arith.constant 0 : index
    %2 = vector.load %arg1[%c0_2, %c0_3, %c0_4] : memref<1x16x4xf32, #tpu.memory_space<vmem>>, vector<1x16x4xf32>
    %3 = arith.truncf %2 : vector<1x16x4xf32> to vector<1x16x4xbf16>
    %c0_5 = arith.constant 0 : index
    %c16 = arith.constant 16 : index
    %c0_6 = arith.constant 0 : index
    %4 = vector.load %arg5[%c0_5, %c16, %c0_6] : memref<1x32x4xbf16, #tpu.memory_space<vmem>>, vector<1x16x4xbf16>
    tpu.vector_store %arg5[%c0_5, %c16, %c0_6], %3 {strides = array<i32>} : memref<1x32x4xbf16, #tpu.memory_space<vmem>>, vector<1x16x4xbf16>,
    %cst_7 = arith.constant 0.000000e+00 : f32
    %5 = vector.broadcast %cst_7 : f32 to vector<16x32xf32>
    %c0_8 = arith.constant 0 : index
    %c14 = arith.constant 14 : index
    %c0_9 = arith.constant 0 : index
    %6 = vector.load %arg5[%c0_8, %c14, %c0_9] : memref<1x32x4xbf16, #tpu.memory_space<vmem>>, vector<1x16x4xbf16>
    %7 = vector.shape_cast %6 : vector<1x16x4xbf16> to vector<16x4xbf16>
    %c0_10 = arith.constant 0 : index
    %c0_11 = arith.constant 0 : index
    %c0_12 = arith.constant 0 : index
    %8 = vector.load %arg2[%c0_10, %c0_11, %c0_12] : memref<3x4x32xbf16, #tpu.memory_space<vmem>>, vector<1x4x32xbf16>
    %9 = vector.shape_cast %8 : vector<1x4x32xbf16> to vector<4x32xbf16>
    %cst_13 = arith.constant dense<0.000000e+00> : vector<16x32xf32>
    %10 = tpu.matmul %7, %9, %cst_13 {dimension_numbers = #tpu.dot_dimension_numbers<[1], [0], [0], [1], [0, 0, 1, 1], [], []>} : vector<16x4xbf16>, vector<4x32xbf16>, vector<16x32xf32> -> vector<16x32xf32>
    %11 = arith.addf %5, %10 : vector<16x32xf32>
    %c0_14 = arith.constant 0 : index
    %c15 = arith.constant 15 : index
    %c0_15 = arith.constant 0 : index
    %12 = vector.load %arg5[%c0_14, %c15, %c0_15] : memref<1x32x4xbf16, #tpu.memory_space<vmem>>, vector<1x16x4xbf16>
    %13 = vector.shape_cast %12 : vector<1x16x4xbf16> to vector<16x4xbf16>
    %c1 = arith.constant 1 : index
    %c0_16 = arith.constant 0 : index
    %c0_17 = arith.constant 0 : index
    %14 = vector.load %arg2[%c1, %c0_16, %c0_17] : memref<3x4x32xbf16, #tpu.memory_space<vmem>>, vector<1x4x32xbf16>
    %15 = vector.shape_cast %14 : vector<1x4x32xbf16> to vector<4x32xbf16>
    %cst_18 = arith.constant dense<0.000000e+00> : vector<16x32xf32>
    %16 = tpu.matmul %13, %15, %cst_18 {dimension_numbers = #tpu.dot_dimension_numbers<[1], [0], [0], [1], [0, 0, 1, 1], [], []>} : vector<16x4xbf16>, vector<4x32xbf16>, vector<16x32xf32> -> vector<16x32xf32>
    %17 = arith.addf %11, %16 : vector<16x32xf32>
    %c0_19 = arith.constant 0 : index
    %c16_20 = arith.constant 16 : index
    %c0_21 = arith.constant 0 : index
    %18 = vector.load %arg5[%c0_19, %c16_20, %c0_21] : memref<1x32x4xbf16, #tpu.memory_space<vmem>>, vector<1x16x4xbf16>
    %19 = vector.shape_cast %18 : vector<1x16x4xbf16> to vector<16x4xbf16>
    %c2 = arith.constant 2 : index
    %c0_22 = arith.constant 0 : index
    %c0_23 = arith.constant 0 : index
    %20 = vector.load %arg2[%c2, %c0_22, %c0_23] : memref<3x4x32xbf16, #tpu.memory_space<vmem>>, vector<1x4x32xbf16>
    %21 = vector.shape_cast %20 : vector<1x4x32xbf16> to vector<4x32xbf16>
    %cst_24 = arith.constant dense<0.000000e+00> : vector<16x32xf32>
    %22 = tpu.matmul %19, %21, %cst_24 {dimension_numbers = #tpu.dot_dimension_numbers<[1], [0], [0], [1], [0, 0, 1, 1], [], []>} : vector<16x4xbf16>, vector<4x32xbf16>, vector<16x32xf32> -> vector<16x32xf32>
    %23 = arith.addf %17, %22 : vector<16x32xf32>
    %cst_25 = arith.constant 5.000000e-01 : f32
    %24 = vector.broadcast %cst_25 : f32 to vector<16x32xf32>
    %25 = arith.mulf %24, %23 : vector<16x32xf32>
    %cst_26 = arith.constant 0.707106769 : f32
    %26 = vector.broadcast %cst_26 : f32 to vector<16x32xf32>
    %27 = arith.mulf %23, %26 : vector<16x32xf32>
    %28 = math.absf %27 : vector<16x32xf32>
    %cst_27 = arith.constant 0.327591091 : f32
    %29 = vector.broadcast %cst_27 : f32 to vector<16x32xf32>
    %30 = arith.mulf %29, %28 : vector<16x32xf32>
    %cst_28 = arith.constant 1.000000e+00 : f32
    %31 = vector.broadcast %cst_28 : f32 to vector<16x32xf32>
    %32 = arith.addf %31, %30 : vector<16x32xf32>
    %cst_29 = arith.constant 1.000000e+00 : f32
    %33 = vector.broadcast %cst_29 : f32 to vector<16x32xf32>
    %34 = arith.divf %33, %32 : vector<16x32xf32>
    %cst_30 = arith.constant 1.06140542 : f32
    %35 = vector.broadcast %cst_30 : f32 to vector<16x32xf32>
    %36 = arith.mulf %35, %34 : vector<16x32xf32>
    %cst_31 = arith.constant -1.45315206 : f32
    %37 = vector.broadcast %cst_31 : f32 to vector<16x32xf32>
    %38 = arith.addf %36, %37 : vector<16x32xf32>
    %39 = arith.mulf %38, %34 : vector<16x32xf32>
    %cst_32 = arith.constant 1.42141378 : f32
    %40 = vector.broadcast %cst_32 : f32 to vector<16x32xf32>
    %41 = arith.addf %39, %40 : vector<16x32xf32>
    %42 = arith.mulf %41, %34 : vector<16x32xf32>
    %cst_33 = arith.constant -0.284496725 : f32
    %43 = vector.broadcast %cst_33 : f32 to vector<16x32xf32>
    %44 = arith.addf %42, %43 : vector<16x32xf32>
    %45 = arith.mulf %44, %34 : vector<16x32xf32>
    %cst_34 = arith.constant 0.254829586 : f32
    %46 = vector.broadcast %cst_34 : f32 to vector<16x32xf32>
    %47 = arith.addf %45, %46 : vector<16x32xf32>
    %48 = arith.mulf %47, %34 : vector<16x32xf32>
    %49 = arith.mulf %28, %28 : vector<16x32xf32>
    %cst_35 = arith.constant 0.000000e+00 : f32
    %50 = vector.broadcast %cst_35 : f32 to vector<16x32xf32>
    %51 = arith.subf %50, %49 : vector<16x32xf32>
    %52 = math.exp %51 : vector<16x32xf32>
    %53 = arith.mulf %48, %52 : vector<16x32xf32>
    %cst_36 = arith.constant 1.000000e+00 : f32
    %54 = vector.broadcast %cst_36 : f32 to vector<16x32xf32>
    %55 = arith.subf %54, %53 : vector<16x32xf32>
    %cst_37 = arith.constant 0.000000e+00 : f32
    %56 = vector.broadcast %cst_37 : f32 to vector<16x32xf32>
    %57 = arith.cmpf olt, %27, %56 : vector<16x32xf32>
    %cst_38 = arith.constant 0.000000e+00 : f32
    %58 = vector.broadcast %cst_38 : f32 to vector<16x32xf32>
    %59 = arith.subf %58, %55 : vector<16x32xf32>
    %60 = arith.select %57, %59, %55 : vector<16x32xi1>, vector<16x32xf32>
    %cst_39 = arith.constant 1.000000e+00 : f32
    %61 = vector.broadcast %cst_39 : f32 to vector<16x32xf32>
    %62 = arith.addf %61, %60 : vector<16x32xf32>
    %63 = arith.mulf %25, %62 : vector<16x32xf32>
    %64 = arith.truncf %63 : vector<16x32xf32> to vector<16x32xbf16>
    %c0_40 = arith.constant 0 : index
    %c0_41 = arith.constant 0 : index
    %65 = vector.load %arg3[%c0_40, %c0_41] : memref<32x32xbf16, #tpu.memory_space<vmem>>, vector<32x32xbf16>
    %cst_42 = arith.constant dense<0.000000e+00> : vector<16x32xf32>
    %66 = tpu.matmul %64, %65, %cst_42 {dimension_numbers = #tpu.dot_dimension_numbers<[1], [0], [0], [1], [0, 0, 1, 1], [], []>} : vector<16x32xbf16>, vector<32x32xbf16>, vector<16x32xf32> -> vector<16x32xf32>
    %67 = vector.shape_cast %66 : vector<16x32xf32> to vector<1x16x32xf32>
    %c0_43 = arith.constant 0 : index
    %c0_44 = arith.constant 0 : index
    %c0_45 = arith.constant 0 : index
    %68 = vector.load %arg4[%c0_43, %c0_44, %c0_45] : memref<1x16x32xf32, #tpu.memory_space<vmem>>, vector<1x16x32xf32>
    tpu.vector_store %arg4[%c0_43, %c0_44, %c0_45], %67 {strides = array<i32>} : memref<1x16x32xf32, #tpu.memory_space<vmem>>, vector<1x16x32xf32>,
    return
  }
  func.func @transform_0(%arg0: i32) -> (i32, i32, i32) {
    %c0_i32 = arith.constant 0 : i32
    %c0_i32_0 = arith.constant 0 : i32
    %c0_i32_1 = arith.constant 0 : i32
    return %arg0, %c0_i32, %c0_i32_0 : i32, i32, i32
  }
  func.func @transform_1(%arg0: i32) -> (i32, i32, i32) {
    %c0_i32 = arith.constant 0 : i32
    %c0_i32_0 = arith.constant 0 : i32
    %c0_i32_1 = arith.constant 0 : i32
    %c0_i32_2 = arith.constant 0 : i32
    return %c0_i32, %c0_i32_0, %c0_i32_1 : i32, i32, i32
  }
  func.func @transform_2(%arg0: i32) -> (i32, i32) {
    %c0_i32 = arith.constant 0 : i32
    %c0_i32_0 = arith.constant 0 : i32
    %c0_i32_1 = arith.constant 0 : i32
    return %c0_i32, %c0_i32_0 : i32, i32
  }
  func.func @transform_3(%arg0: i32) -> (i32, i32, i32) {
    %c0_i32 = arith.constant 0 : i32
    %c0_i32_0 = arith.constant 0 : i32
    %c0_i32_1 = arith.constant 0 : i32
    return %arg0, %c0_i32, %c0_i32_0 : i32, i32, i32
  }
}

</mosaic_0001>

<llo_original>
// kernel: tpu_custom_call.1
$region0: #{tpu_custom_call.1}
  #allocation0 [shape = 'u32[]', space=smem, size = 0x4, offset = 0x4, fixed_abs, tag = 'smem constant byte address 0x4 - core index']
  #allocation1 [shape = 'u32[144,128]{1,0:T(1,128)}', space=vmem, size = 0x12000, scoped, tag = 'internal scratch']
  #allocation2 [shape = 'bf16[1,32,4]{2,1,0:T(8,128)(2,1)}', space=vmem, size = 0x2000, scoped, tag = 'scratch operand']
  %s0 = inlined_call_operand.vmem [shape: f32[2,16,4], index: 0, kind: input, shape index: {}]
  %s1 = inlined_call_operand.vmem [shape: bf16[3,4,32], index: 1, kind: input, shape index: {}]
  %s2 = inlined_call_operand.vmem [shape: bf16[32,32], index: 2, kind: input, shape index: {}]
  %s3 = inlined_call_operand.hbm [shape: f32[2,16,32], index: 3, kind: output, shape index: {}]
  %s4 = sld [smem:[#allocation0]]
  $region45: #{tpu_custom_call.1} parent=0
    _
  %s6 = ssub.s32 1, %s4
  %s7 = scalar_select 0, %s6, %s4
  $region1: #{tpu_custom_call.1} parent=0
    #allocation3 [shape = 'u8[16384]{0}', space=vmem, size = 0x4000, scoped, tag = 'output window, operand 0']
    #allocation4 [shape = 's32[2]{0}', space=sflag, size = 0x8, scoped, tag = 'scoped memory for tpu_custom_call.1']
    %8 = vsyncpa [#allocation4], 0
    %s9 = scalar_lea.sflag [#allocation4], 1
    %10 = vsyncpa %s9, 0
    loop: start=0, step=1, limit=4
    $region2: #{tpu_custom_call.1} parent=1 // loop_pre_header
      _
    $region3: #{tpu_custom_call.1} parent=1 // loop_header
      %s12 = sphi 0, %s16
      %p13 = scmp.ge.s32.totalorder %s12, 4
      %s22 = sphi 0, %s24
      %s25 = sphi 0, %s22
      %s26 = sphi 0, %s25
      %s42 = sphi 0, %s26
      %s46 = sphi 0, %s46
      %s48 = sphi 0, %s46
      %s49 = sphi 0, %s48
      %s63 = sphi 0, %s49
      %s67 = sphi 0, %s67
      %s69 = sphi 0, %s67
      %s70 = sphi 0, %s69
      %s84 = sphi 0, %s70
      %s90 = sphi 0, %s92
      %s93 = sphi 0, %s90
      %s94 = sphi 0, %s93
      %s110 = sphi 0, %s94
    $region4: #{tpu_custom_call.1} parent=1 // loop_header_branch
      %15 = sbr.rel (%p13) target = $region8
    $region5: #{tpu_custom_call.1} parent=1 // loop_body
      %s17 = ssub.s32 %s12, 1
      %s18 = ssub.s32 %s12, 2
      %s19 = sadd.s32 %s12, 1
      %s20 = ssub.s32 %s12, %s19
      %p21 = scmp.eq.s32.totalorder %s20, 0
      %s23 = sadd.s32 %s22, 1
      %s24 = scalar_select %p21, %s22, %s23
      %p27 = pneg %p21
      %p28 = scmp.eq.s32.totalorder %s12, 1
      %p29 = por %p27, %p28
      %p30 = scmp.ne.s32.totalorder %s22, %s25
      %p31 = scmp.eq.s32.totalorder %s12, 0
      %p32 = por %p30, %p31
      %p33 = scmp.ne.s32.totalorder %s22, %s25
      %p34 = scmp.eq.s32.totalorder %s17, 1
      %p35 = por %p33, %p34
      %p36 = scmp.ne.s32.totalorder %s25, %s26
      %p37 = scmp.eq.s32.totalorder %s17, 0
      %p38 = por %p36, %p37
      %p39 = scmp.ne.s32.totalorder %s25, %s26
      %p40 = scmp.eq.s32.totalorder %s18, 1
      %p41 = por %p39, %p40
      %p43 = scmp.ne.s32.totalorder %s26, %s42
      %p44 = scmp.eq.s32.totalorder %s18, 0
      %p45 = por %p43, %p44
      %s47 = sadd.s32 %s46, 1
      %p50 = scmp.eq.s32.totalorder %s12, 1
      %p51 = scmp.ne.s32.totalorder %s46, %s48
      %p52 = scmp.eq.s32.totalorder %s12, 0
      %p53 = por %p51, %p52
      %p54 = scmp.ne.s32.totalorder %s46, %s48
      %p55 = scmp.eq.s32.totalorder %s17, 1
      %p56 = por %p54, %p55
      %p57 = scmp.ne.s32.totalorder %s48, %s49
      %p58 = scmp.eq.s32.totalorder %s17, 0
      %p59 = por %p57, %p58
      %p60 = scmp.ne.s32.totalorder %s48, %s49
      %p61 = scmp.eq.s32.totalorder %s18, 1
      %p62 = por %p60, %p61
      %p64 = scmp.ne.s32.totalorder %s49, %s63
      %p65 = scmp.eq.s32.totalorder %s18, 0
      %p66 = por %p64, %p65
      %s68 = sadd.s32 %s67, 1
      %p71 = scmp.eq.s32.totalorder %s12, 1
      %p72 = scmp.ne.s32.totalorder %s67, %s69
      %p73 = scmp.eq.s32.totalorder %s12, 0
      %p74 = por %p72, %p73
      %p75 = scmp.ne.s32.totalorder %s67, %s69
      %p76 = scmp.eq.s32.totalorder %s17, 1
      %p77 = por %p75, %p76
      %p78 = scmp.ne.s32.totalorder %s69, %s70
      %p79 = scmp.eq.s32.totalorder %s17, 0
      %p80 = por %p78, %p79
      %p81 = scmp.ne.s32.totalorder %s69, %s70
      %p82 = scmp.eq.s32.totalorder %s18, 1
      %p83 = por %p81, %p82
      %p85 = scmp.ne.s32.totalorder %s70, %s84
      %p86 = scmp.eq.s32.totalorder %s18, 0
      %p87 = por %p85, %p86
      %s88 = ssub.s32 %s12, %s19
      %p89 = scmp.eq.s32.totalorder %s88, 0
      %s91 = sadd.s32 %s90, 1
      %s92 = scalar_select %p89, %s90, %s91
      %p95 = pneg %p89
      %p96 = scmp.eq.s32.totalorder %s12, 1
      %p97 = por %p95, %p96
      %p98 = scmp.ne.s32.totalorder %s90, %s93
      %p99 = scmp.eq.s32.totalorder %s12, 0
      %p100 = por %p98, %p99
      %p101 = scmp.ne.s32.totalorder %s90, %s93
      %p102 = scmp.eq.s32.totalorder %s17, 1
      %p103 = por %p101, %p102
      %p104 = scmp.ne.s32.totalorder %s93, %s94
      %p105 = scmp.eq.s32.totalorder %s17, 0
      %p106 = por %p104, %p105
      %p107 = scmp.ne.s32.totalorder %s93, %s94
      %p108 = scmp.eq.s32.totalorder %s18, 1
      %p109 = por %p107, %p108
      %p111 = scmp.ne.s32.totalorder %s94, %s110
      %p112 = scmp.eq.s32.totalorder %s18, 0
      %p113 = por %p111, %p112
      %p114 = scmp.le.s32.totalorder 1, %s12
      %p115 = scmp.lt.s32.totalorder %s12, 3
      %p116 = pnand %p114, %p115
      %p117 = pneg %p116
      // Predicated region
      $region9: #{tpu_custom_call.1} parent=5 // pred_check
        _
      $region10: #{tpu_custom_call.1} parent=5 // pred_check_branch
        %119 = sbr.rel (%p116) target = $region12
      $region11: #{tpu_custom_call.1} parent=5 // pred_region
        %s120 = ssub.s32 %s12, 1
        // Predicated region
        $region13: #{tpu_custom_call.1} parent=11 // pred_check
          %p121 = pneg %p59
        $region14: #{tpu_custom_call.1} parent=11 // pred_check_branch
          %123 = sbr.rel (%p121) target = $region16
        $region15: #{tpu_custom_call.1} parent=11 // pred_region
          _
        $region16: #{tpu_custom_call.1} parent=11 // pred_fallthru
          _
        // Predicated region
        $region17: #{tpu_custom_call.1} parent=11 // pred_check
          %p124 = pneg %p80
        $region18: #{tpu_custom_call.1} parent=11 // pred_check_branch
          %126 = sbr.rel (%p124) target = $region20
        $region19: #{tpu_custom_call.1} parent=11 // pred_region
          _
        $region20: #{tpu_custom_call.1} parent=11 // pred_fallthru
          _
      $region12: #{tpu_custom_call.1} parent=5 // pred_fallthru
        _
      %p127 = scmp.lt.s32.totalorder %s12, 2
      // Predicated region
      $region21: #{tpu_custom_call.1} parent=5 // pred_check
        %p128 = pneg %p127
      $region22: #{tpu_custom_call.1} parent=5 // pred_check_branch
        %130 = sbr.rel (%p128) target = $region24
      $region23: #{tpu_custom_call.1} parent=5 // pred_region
        // Predicated region
        $region25: #{tpu_custom_call.1} parent=23 // pred_check
          %p131 = pneg %p32
        $region26: #{tpu_custom_call.1} parent=23 // pred_check_branch
          %133 = sbr.rel (%p131) target = $region28
        $region27: #{tpu_custom_call.1} parent=23 // pred_region
          %p134 = scmp.lt.s32.totalorder %s12, 1
          %s135 = scalar_select %p134, %s12, 1
          %s136 = smul.addr %s135, 2
          %s137 = smul.addr %s136, 8
          %s138 = scalar_lea.vmem %s0, %s137
        $region28: #{tpu_custom_call.1} parent=23 // pred_fallthru
          _
      $region24: #{tpu_custom_call.1} parent=5 // pred_fallthru
        _
      %p139 = scmp.le.s32.totalorder 1, %s12
      %p140 = scmp.lt.s32.totalorder %s12, 3
      %p141 = pnand %p139, %p140
      %p142 = pneg %p141
      // Predicated region
      $region29: #{tpu_custom_call.1} parent=5 // pred_check
        _
      $region30: #{tpu_custom_call.1} parent=5 // pred_check_branch
        %144 = sbr.rel (%p141) target = $region32
      $region31: #{tpu_custom_call.1} parent=5 // pred_region
        %s145 = ssub.s32 %s12, 1
        %p146 = scmp.lt.s32.totalorder %s17, 1
        %s147 = scalar_select %p146, %s17, 1
        %s148 = smul.addr %s147, 2
        %s149 = smul.addr %s148, 8
        %s150 = scalar_lea.vmem %s0, %s149
        %p151 = pneg %p38
        %p152 = pneg %p35
        %p153 = pneg %p59
        %p154 = pneg %p56
        %p155 = pneg %p80
        %p156 = pneg %p77
        %p157 = pneg %p106
        %p158 = pneg %p103
        %s159 = sand.u32 %s93, 1
        %s160 = scalar_lea.sflag [#allocation4], %s159
        %s161 = sand.u32 %s93, 1
        %s162 = smul.addr %s161, 16
        %s163 = scalar_lea.vmem [#allocation3], %s162
        %p164 = scmp.lt.s32.totalorder %s17, 1
        %s165 = scalar_select %p164, %s17, 1
        %s166 = smul.addr %s165, 2
        %s167 = smul.addr %s166, 8
        %s168 = scalar_lea.vmem %s0, %s167
        %vm170 = vcmask 27648
        %171 = vst.msk [vmem:[#allocation2] sm:$0xf] %vm170, 0
        %172 = vst.msk [vmem:[#allocation2 + $0x4] sm:$0xf] %vm170, 0
        %v173 = vld [vmem:[%s168] sm:$0xff]
        %v174 = vld [vmem:[%s168 + $0x8] sm:$0xff]
        %v175 = vpack.c.bf16 %v174, %v173
        %v177 = vunpack.c.l.b16 %v175
        %v178 = vunpack.c.h.b16 %v175
        %v179 = vpack.c.b16 %v177, %v177
        %v180 = vpack.c.b16 %v178, %v178
        %183 = vst.msk [vmem:[#allocation2 + $0x8] sm:$0xf] %vm170, %v179
        %184 = vst.msk [vmem:[#allocation2 + $0xc] sm:$0xf] %vm170, %v180
        %v185 = vld [vmem:[#allocation2 + $0x4] sm:$0x8]
        %v186 = vld [vmem:[#allocation2 + $0x8] sm:$0xf]
        %v187 = vld [vmem:[#allocation2 + $0xc] sm:$0x7]
        %v188 = vld [vmem:[%s1] sm:$0x3]
        %v189 = vld [vmem:[#allocation2 + $0xc] sm:$0xf]
        %s190 = scalar_lea.vmem %s1, 2
        %v191 = vld [vmem:[%s190] sm:$0x3]
        %v195 = vunpack.c.l.b16 %v185
        %v196 = vunpack.c.l.b16 %v186
        %v197 = vunpack.c.l.b16 %v189
        %v198 = vpack.c.b16 %v196, %v195
        %v199 = vpack.c.b16 %v197, %v197
        %vm200 = vsmask.f32 4352
        %v202 = vshrl.u32 %v198, 16
        %v204 = vrot.slane %v202, 3
        %v205 = vshll.u32 %v198, 16
        %v207 = vrot.slane %v205, 4
        %v208 = vor.u32 %v204, %v207
        %v210 = vshrl.u32 %v199, 16
        %v212 = vrot.slane %v210, 3
        %v213 = vshll.u32 %v199, 16
        %v215 = vrot.slane %v213, 4
        %v216 = vor.u32 %v212, %v215
        %v217 = vsel %vm200, %v208, %v216
        %vm218 = vcmask 31744
        %v220 = vsel %vm218, %v217, 0
        %vm222 = vcmask 1041408
        %v224 = vsel %vm222, %v191, 0
        %226 = vmatprep.subr.bf16.mxu0 0
        %227 = vmatpush1.bf16.msra.mxu0 0
        %228 = vmatprep.subr.bf16.mxu0 0
        %229 = vmatpush1.bf16.msra.mxu0 0
        %230 = vmatprep.subr.bf16.mxu0 0
        %231 = vmatpush1.bf16.msra.mxu0 0
        %232 = vmatprep.subr.bf16.mxu0 0
        %233 = vmatpush1.bf16.msra.mxu0 0
        %234 = vmatprep.subr.bf16.mxu0 0
        %235 = vmatpush1.bf16.msra.mxu0 0
        %236 = vmatprep.subr.bf16.mxu0 0
        %237 = vmatpush1.bf16.msra.mxu0 0
        %238 = vmatprep.subr.bf16.mxu0 0
        %239 = vmatpush1.bf16.msra.mxu0 0
        %240 = vmatprep.subr.bf16.mxu0 0
        %241 = vmatpush1.bf16.msra.mxu0 %v224
        %242 = vmatprep.subr.bf16.mxu0 0
        %243 = vmatpush2.bf16.msra.mxu0 0
        %244 = vmatprep.subr.bf16.mxu0 0
        %245 = vmatpush2.bf16.msra.mxu0 0
        %246 = vmatprep.subr.bf16.mxu0 0
        %247 = vmatpush2.bf16.msra.mxu0 0
        %248 = vmatprep.subr.bf16.mxu0 0
        %249 = vmatpush2.bf16.msra.mxu0 0
        %250 = vmatprep.subr.bf16.mxu0 0
        %251 = vmatpush2.bf16.msra.mxu0 0
        %252 = vmatprep.subr.bf16.mxu0 0
        %253 = vmatpush2.bf16.msra.mxu0 0
        %254 = vmatprep.subr.bf16.mxu0 0
        %255 = vmatpush2.bf16.msra.mxu0 0
        %256 = vmatprep.subr.bf16.mxu0 0
        %257 = vmatpush2.bf16.msra.mxu0 0
        %258 = vmatprep.mubr.bf16.mxu0 0
        %259 = vmatmul.mubr.bf16.gmra.mxu0 %v220
        %v260 = vpop.f32.mrf.mxu0
        %v261 = vadd.f32 0.0, %v260
        %v262 = vpop.f32.mrf.mxu0
        %v263 = vpop.f32.mrf.mxu0
        %v264 = vadd.f32 0.0, %v263
        %v265 = vpop.f32.mrf.mxu0
        %266 = vdwg.mxu0
        %v268 = vunpack.c.l.b16 %v187
        %v269 = vpack.c.b16 %v268, %v268
        %vm270 = vcmask 1044480
        %v271 = vrot.slane %v198, 3
        %v272 = vrot.slane %v269, 3
        %v273 = vsel %vm270, %v271, %v272
        %v275 = vsel %vm218, %v273, 0
        %v278 = vsel %vm222, %v188, 0
        %280 = vmatprep.subr.bf16.mxu0 0
        %281 = vmatpush1.bf16.msra.mxu0 0
        %282 = vmatprep.subr.bf16.mxu0 0
        %283 = vmatpush1.bf16.msra.mxu0 0
        %284 = vmatprep.subr.bf16.mxu0 0
        %285 = vmatpush1.bf16.msra.mxu0 0
        %286 = vmatprep.subr.bf16.mxu0 0
        %287 = vmatpush1.bf16.msra.mxu0 0
        %288 = vmatprep.subr.bf16.mxu0 0
        %289 = vmatpush1.bf16.msra.mxu0 0
        %290 = vmatprep.subr.bf16.mxu0 0
        %291 = vmatpush1.bf16.msra.mxu0 0
        %292 = vmatprep.subr.bf16.mxu0 0
        %293 = vmatpush1.bf16.msra.mxu0 0
        %294 = vmatprep.subr.bf16.mxu0 0
        %295 = vmatpush1.bf16.msra.mxu0 %v278
        %296 = vmatprep.subr.bf16.mxu0 0
        %297 = vmatpush2.bf16.msra.mxu0 0
        %298 = vmatprep.subr.bf16.mxu0 0
        %299 = vmatpush2.bf16.msra.mxu0 0
        %300 = vmatprep.subr.bf16.mxu0 0
        %301 = vmatpush2.bf16.msra.mxu0 0
        %302 = vmatprep.subr.bf16.mxu0 0
        %303 = vmatpush2.bf16.msra.mxu0 0
        %304 = vmatprep.subr.bf16.mxu0 0
        %305 = vmatpush2.bf16.msra.mxu0 0
        %306 = vmatprep.subr.bf16.mxu0 0
        %307 = vmatpush2.bf16.msra.mxu0 0
        %308 = vmatprep.subr.bf16.mxu0 0
        %309 = vmatpush2.bf16.msra.mxu0 0
        %310 = vmatprep.subr.bf16.mxu0 0
        %311 = vmatpush2.bf16.msra.mxu0 0
        %312 = vmatprep.mubr.bf16.mxu0 0
        %313 = vmatmul.mubr.bf16.gmra.mxu0 %v275
        %v314 = vpop.f32.mrf.mxu0
        %v315 = vadd.f32 %v261, %v314
        %v316 = vpop.f32.mrf.mxu0
        %v317 = vpop.f32.mrf.mxu0
        %v318 = vadd.f32 %v264, %v317
        %v319 = vpop.f32.mrf.mxu0
        %320 = vdwg.mxu0
        %s321 = scalar_lea.vmem %s1, 4
        %v322 = vld [vmem:[%s321] sm:$0x3]
        %v323 = vpack.c.b16 %v197, %v196
        %v325 = vsel %vm218, %v323, 0
        %v328 = vsel %vm222, %v322, 0
        %330 = vmatprep.subr.bf16.mxu0 0
        %331 = vmatpush1.bf16.msra.mxu0 0
        %332 = vmatprep.subr.bf16.mxu0 0
        %333 = vmatpush1.bf16.msra.mxu0 0
        %334 = vmatprep.subr.bf16.mxu0 0
        %335 = vmatpush1.bf16.msra.mxu0 0
        %336 = vmatprep.subr.bf16.mxu0 0
        %337 = vmatpush1.bf16.msra.mxu0 0
        %338 = vmatprep.subr.bf16.mxu0 0
        %339 = vmatpush1.bf16.msra.mxu0 0
        %340 = vmatprep.subr.bf16.mxu0 0
        %341 = vmatpush1.bf16.msra.mxu0 0
        %342 = vmatprep.subr.bf16.mxu0 0
        %343 = vmatpush1.bf16.msra.mxu0 0
        %344 = vmatprep.subr.bf16.mxu0 0
        %345 = vmatpush1.bf16.msra.mxu0 %v328
        %346 = vmatprep.subr.bf16.mxu0 0
        %347 = vmatpush2.bf16.msra.mxu0 0
        %348 = vmatprep.subr.bf16.mxu0 0
        %349 = vmatpush2.bf16.msra.mxu0 0
        %350 = vmatprep.subr.bf16.mxu0 0
        %351 = vmatpush2.bf16.msra.mxu0 0
        %352 = vmatprep.subr.bf16.mxu0 0
        %353 = vmatpush2.bf16.msra.mxu0 0
        %354 = vmatprep.subr.bf16.mxu0 0
        %355 = vmatpush2.bf16.msra.mxu0 0
        %356 = vmatprep.subr.bf16.mxu0 0
        %357 = vmatpush2.bf16.msra.mxu0 0
        %358 = vmatprep.subr.bf16.mxu0 0
        %359 = vmatpush2.bf16.msra.mxu0 0
        %360 = vmatprep.subr.bf16.mxu0 0
        %361 = vmatpush2.bf16.msra.mxu0 0
        %362 = vmatprep.mubr.bf16.mxu0 0
        %363 = vmatmul.mubr.bf16.gmra.mxu0 %v325
        %v364 = vpop.f32.mrf.mxu0
        %v365 = vadd.f32 0.0, %v364
        %v366 = vpop.f32.mrf.mxu0
        %v367 = vpop.f32.mrf.mxu0
        %v368 = vadd.f32 0.0, %v367
        %v369 = vpop.f32.mrf.mxu0
        %370 = vdwg.mxu0
        %v371 = vadd.f32 %v315, %v365
        %v372 = vadd.f32 %v318, %v368
        %v373 = vmul.f32 %v371, 0.5
        %v374 = vmul.f32 %v372, 0.5
        %v375 = vmul.f32 %v371, 0.70710677
        %v376 = vmul.f32 %v372, 0.70710677
        %v377 = vand.u32 2147483647, %v375
        %v378 = vand.u32 2147483647, %v376
        %v379 = vmul.f32 %v377, 0.3275911
        %v380 = vmul.f32 %v378, 0.3275911
        %v381 = vadd.f32 %v379, 1.0
        %v382 = vadd.f32 %v380, 1.0
        %v383 = vrcp.pop %v381
        %v384 = vmul.f32 1.0, %v383
        %v385 = vrcp.pop %v382
        %v386 = vmul.f32 1.0, %v385
        %v387 = vmul.f32 %v384, 1.0614054
        %v388 = vmul.f32 %v386, 1.0614054
        %v389 = vadd.f32 %v387, -1.4531521
        %v390 = vadd.f32 %v388, -1.4531521
        %v391 = vmul.f32 %v389, %v384
        %v392 = vmul.f32 %v390, %v386
        %v393 = vadd.f32 %v391, 1.4214138
        %v394 = vadd.f32 %v392, 1.4214138
        %v395 = vmul.f32 %v393, %v384
        %v396 = vmul.f32 %v394, %v386
        %v397 = vadd.f32 %v395, -0.28449672
        %v398 = vadd.f32 %v396, -0.28449672
        %v399 = vmul.f32 %v397, %v384
        %v400 = vmul.f32 %v398, %v386
        %v401 = vadd.f32 %v399, 0.2548296
        %v402 = vadd.f32 %v400, 0.2548296
        %v403 = vmul.f32 %v401, %v384
        %v404 = vmul.f32 %v402, %v386
        %v405 = vmul.f32 %v377, %v377
        %v406 = vmul.f32 %v378, %v378
        %v407 = vsub.f32 0.0, %v405
        %v408 = vsub.f32 0.0, %v406
        %v409 = vmul.f32 %v407, 1.442695
        %v410 = vpow.pop %v409
        %v411 = vmul.f32 %v408, 1.442695
        %v412 = vpow.pop %v411
        %v413 = vmul.f32 %v403, %v410
        %v414 = vmul.f32 %v404, %v412
        %v415 = vsub.f32 1.0, %v413
        %v416 = vsub.f32 1.0, %v414
        %vm417 = vcmp.lt.f32.partialorder %v375, 0.0
        %vm418 = vcmp.lt.f32.partialorder %v376, 0.0
        %v419 = vsub.f32 0.0, %v415
        %v420 = vsub.f32 0.0, %v416
        %v421 = vsel %vm417, %v419, %v415
        %v422 = vsel %vm418, %v420, %v416
        %v423 = vadd.f32 %v421, 1.0
        %v424 = vadd.f32 %v422, 1.0
        %v425 = vmul.f32 %v373, %v423
        %v426 = vmul.f32 %v374, %v424
        %v427 = vpack.c.bf16 %v426, %v425
        %v428 = vld [vmem:[%s2] sm:$0xf]
        %v429 = vld [vmem:[%s2 + $0x4] sm:$0xf]
        %v430 = vld [vmem:[%s2 + $0x8] sm:$0xf]
        %v431 = vld [vmem:[%s2 + $0xc] sm:$0xf]
        %v436 = vunpack.c.l.b16 %v428
        %v437 = vunpack.c.l.b16 %v429
        %v438 = vunpack.c.l.b16 %v430
        %v439 = vunpack.c.l.b16 %v431
        %v440 = vpack.c.b16 %v437, %v436
        %v441 = vpack.c.b16 %v439, %v438
        %vm444 = vcmask 261120
        %v446 = vsel %vm444, %v427, 0
        %448 = vmatprep.subr.bf16.mxu0 0
        %449 = vmatpush1.bf16.msra.mxu0 0
        %450 = vmatprep.subr.bf16.mxu0 0
        %451 = vmatpush1.bf16.msra.mxu0 0
        %452 = vmatprep.subr.bf16.mxu0 0
        %453 = vmatpush1.bf16.msra.mxu0 0
        %454 = vmatprep.subr.bf16.mxu0 0
        %455 = vmatpush1.bf16.msra.mxu0 0
        %456 = vmatprep.subr.bf16.mxu0 0
        %457 = vmatpush1.bf16.msra.mxu0 0
        %458 = vmatprep.subr.bf16.mxu0 0
        %459 = vmatpush1.bf16.msra.mxu0 0
        %460 = vmatprep.subr.bf16.mxu0 0
        %461 = vmatpush1.bf16.msra.mxu0 %v441
        %462 = vmatprep.subr.bf16.mxu0 0
        %463 = vmatpush1.bf16.msra.mxu0 %v440
        %464 = vmatprep.subr.bf16.mxu0 0
        %465 = vmatpush2.bf16.msra.mxu0 0
        %466 = vmatprep.subr.bf16.mxu0 0
        %467 = vmatpush2.bf16.msra.mxu0 0
        %468 = vmatprep.subr.bf16.mxu0 0
        %469 = vmatpush2.bf16.msra.mxu0 0
        %470 = vmatprep.subr.bf16.mxu0 0
        %471 = vmatpush2.bf16.msra.mxu0 0
        %472 = vmatprep.subr.bf16.mxu0 0
        %473 = vmatpush2.bf16.msra.mxu0 0
        %474 = vmatprep.subr.bf16.mxu0 0
        %475 = vmatpush2.bf16.msra.mxu0 0
        %476 = vmatprep.subr.bf16.mxu0 0
        %477 = vmatpush2.bf16.msra.mxu0 0
        %478 = vmatprep.subr.bf16.mxu0 0
        %479 = vmatpush2.bf16.msra.mxu0 0
        %480 = vmatprep.mubr.bf16.mxu0 0
        %481 = vmatmul.mubr.bf16.gmra.mxu0 %v446
        %v482 = vpop.f32.mrf.mxu0
        %v483 = vadd.f32 0.0, %v482
        %v484 = vpop.f32.mrf.mxu0
        %v485 = vpop.f32.mrf.mxu0
        %v486 = vadd.f32 0.0, %v485
        %v487 = vpop.f32.mrf.mxu0
        %488 = vdwg.mxu0
        %489 = vst.msk [vmem:[%s163] sm:$0xff] %vm444, %v483
        %490 = vst.msk [vmem:[%s163 + $0x8] sm:$0xff] %vm444, %v486
        %s491 = sand.u32 %s93, 1
        %s492 = scalar_lea.sflag [#allocation4], %s491
        %s493 = sand.u32 %s93, 1
        %s494 = smul.addr %s493, 16
        %s495 = scalar_lea.vmem [#allocation3], %s494
        // Predicated region
        $region33: #{tpu_custom_call.1} parent=31 // pred_check
          %p496 = pneg %p103
        $region34: #{tpu_custom_call.1} parent=31 // pred_check_branch
          %498 = sbr.rel (%p496) target = $region36
        $region35: #{tpu_custom_call.1} parent=31 // pred_region
          %s500 = ssub.s32 256, 256
          %501 = vsyncadd %s492, %s500
          %s502 = smul.addr %s17, 2
          %s503 = smul.addr %s502, 128
          %s504 = scalar_lea.hbm %s3, %s503
          %s505 = sshll.u32 %s495, 4
          %s506 = int_to_ptr.vmem [resolvable:$true] %s505
          %511 = dma.vmem_to_hbm [thread:$0]  %s506, 256, %s504, %s492, 128, 128, 8
        $region36: #{tpu_custom_call.1} parent=31 // pred_fallthru
          _
      $region32: #{tpu_custom_call.1} parent=5 // pred_fallthru
        _
      %p512 = scmp.le.s32.totalorder 2, %s12
      // Predicated region
      $region37: #{tpu_custom_call.1} parent=5 // pred_check
        %p513 = pneg %p512
      $region38: #{tpu_custom_call.1} parent=5 // pred_check_branch
        %515 = sbr.rel (%p513) target = $region40
      $region39: #{tpu_custom_call.1} parent=5 // pred_region
        %s516 = ssub.s32 %s12, 2
        // Predicated region
        $region41: #{tpu_custom_call.1} parent=39 // pred_check
          %p517 = pneg %p109
        $region42: #{tpu_custom_call.1} parent=39 // pred_check_branch
          %519 = sbr.rel (%p517) target = $region44
        $region43: #{tpu_custom_call.1} parent=39 // pred_region
          %s520 = sand.u32 %s94, 1
          %s521 = scalar_lea.sflag [#allocation4], %s520
          %s522 = sand.u32 %s94, 1
          %s523 = smul.addr %s522, 16
          %s524 = scalar_lea.vmem [#allocation3], %s523
          %525 = dma.done %s521, 256
        $region44: #{tpu_custom_call.1} parent=39 // pred_fallthru
          _
      $region40: #{tpu_custom_call.1} parent=5 // pred_fallthru
        _
    $region6: #{tpu_custom_call.1} parent=1 // loop_footer
      %s16 = sadd.s32 1, %s12
    $region7: #{tpu_custom_call.1} parent=1 // loop_footer_branch
      %11 = sbr.rel target = $region3
    $region8: #{tpu_custom_call.1} parent=1 // loop_exit
      _
    %526 = vsyncpa [#allocation4], 1
    %s527 = scalar_lea.sflag [#allocation4], 1
    %528 = vsyncpa %s527, 1

</llo_original>
